<compile_context>
chip_gen: v6e
topology: v6e:2x2x1
jax: 0.10.0
libtpu: 0.0.40
codegen_flags: <defaults>
</compile_context>

<pallas_src>
import functools

import jax
import jax.numpy as jnp
from jax.experimental import pallas as pl
from jax.experimental.pallas import tpu as pltpu

KSIZE = 25
SELU_ALPHA = 1.6732632423543772
SELU_SCALE = 1.0507009873554805
BN_EPS = 1e-5
_LANE = 128
_MAX_L_TILE = 8192   # hard cap on any L tile (amortizes per-step overhead)


def _selu(x):
    neg = SELU_ALPHA * (jnp.exp(jnp.minimum(x, 0.0)) - 1.0)
    return SELU_SCALE * jnp.where(x > 0, x, neg)


def _colsums(z):
    """Per-channel (sum, sum_sq) over the L axis of a (C, TL) f32 tile."""
    s = jnp.sum(z, axis=1, keepdims=True)
    ss = jnp.sum(z * z, axis=1, keepdims=True)
    return jnp.concatenate([s, ss], axis=1)          # (C, 2)


def _vmem_caps():
    """Return (vmem_limit_bytes, tile_budget_bytes); conservative fallback."""
    limit = 48 << 20                                  # safe on v7x (64 MiB phys)
    try:
        info = pltpu.get_tpu_info()
        cap = int(getattr(info, "vmem_capacity_bytes"))
        limit = max(32 << 20, min(int(cap * 0.75), 100 << 20))
    except Exception:
        pass
    budget = int(limit * 0.55)                        # headroom for dbl-buffering
    return limit, budget


def _pick_l_tile(L, per_col_bytes, budget_bytes, cap):
    t = budget_bytes // max(int(per_col_bytes), 1)
    t = min(int(t), int(cap), _MAX_L_TILE)
    t = max((t // _LANE) * _LANE, _LANE)
    return L if t >= L else t


# ---------------------------------------------------------------------------
# Stage 1: fused [depthwise k=25 dilated conv + 1x1 conv] as one im2col matmul
# + SELU + per-sample BN1 partial sums.  Grid: (N, L-tiles), NCL layout.
# Halo comes from prev/center/next blocks of x (overlap handled with masks).
# ---------------------------------------------------------------------------
def _stage1_kernel(dilation, L_total, multi_tile, *refs):
    if multi_tile:
        xl_ref, xc_ref, xr_ref, wft_ref, bf_ref, h1_ref, sums_ref = refs
    else:
        xc_ref, wft_ref, bf_ref, h1_ref, sums_ref = refs
        xl_ref = xr_ref = None

    cin = xc_ref.shape[1]
    TL = xc_ref.shape[2]
    pad = (dilation * (KSIZE - 1)) // 2
    dt = wft_ref.dtype                                # build slab in matmul dtype
    t = pl.program_id(1)
    nlt = pl.num_programs(1)

    xc = xc_ref[0].astype(dt)                         # (Cin, TL)
    if L_total % TL != 0:
        # mask the ragged tail so valid columns near L get a zero right-halo
        colc = t * TL + jax.lax.broadcasted_iota(jnp.int32, (cin, TL), 1)
        xc = jnp.where(colc < L_total, xc, jnp.zeros_like(xc))

    if multi_tile:
        xl = xl_ref[0, :, TL - pad:].astype(dt)       # (Cin, pad) from tile t-1
        xl = jnp.where(t > 0, xl, jnp.zeros_like(xl))
        xr = xr_ref[0, :, :pad].astype(dt)            # (Cin, pad) from tile t+1
        colr = (t + 1) * TL + jax.lax.broadcasted_iota(jnp.int32, (cin, pad), 1)
        xr = jnp.where(colr < L_total, xr, jnp.zeros_like(xr))
    else:
        xl = jnp.zeros((cin, pad), dt)
        xr = jnp.zeros((cin, pad), dt)

    xp = jnp.concatenate([xl, xc, xr], axis=1)        # (Cin, TL + 2*pad)
    # im2col slab: row (k*Cin + c) = x[c, l + k*dil - pad] for local column l
    slab = jnp.concatenate(
        [xp[:, k * dilation:k * dilation + TL] for k in range(KSIZE)], axis=0)

    h = jnp.dot(wft_ref[...], slab, preferred_element_type=jnp.float32)
    h = _selu(h + bf_ref[...])                        # (D, TL) f32
    h1_ref[0] = h.astype(h1_ref.dtype)

    # BN1 partial sums: resident accumulator across L-tiles (one writeback / n)
    @pl.when(t == 0)
    def _init():
        sums_ref[0] = jnp.zeros(sums_ref.shape[1:], sums_ref.dtype)

    if L_total % TL == 0:
        sums_ref[0] += _colsums(h)
    else:
        is_last = t == nlt - 1

        @pl.when(t != nlt - 1)
        def _full():
            sums_ref[0] += _colsums(h)

        @pl.when(is_last)
        def _masked():
            colh = t * TL + jax.lax.broadcasted_iota(jnp.int32, h.shape, 1)
            sums_ref[0] += _colsums(jnp.where(colh < L_total, h, 0.0))


# ---------------------------------------------------------------------------
# Stage 2: (BN1 + depthwise-1x1) folded into a D->Cout matmul + SELU + BN2
# partial sums.  Pointwise in L, grid: (N, L-tiles).
# ---------------------------------------------------------------------------
def _stage2_kernel(L_total, h1_ref, w2t_ref, b2_ref, ypre_ref, sums_ref):
    TL = h1_ref.shape[2]
    t = pl.program_id(1)
    nlt = pl.num_programs(1)

    h = h1_ref[0].astype(w2t_ref.dtype)               # (D, TL)
    y = jnp.dot(w2t_ref[...], h, preferred_element_type=jnp.float32)
    y = _selu(y + b2_ref[...])                        # (Cout, TL) f32
    ypre_ref[0] = y.astype(ypre_ref.dtype)

    @pl.when(t == 0)
    def _init():
        sums_ref[0] = jnp.zeros(sums_ref.shape[1:], sums_ref.dtype)

    if L_total % TL == 0:
        sums_ref[0] += _colsums(y)
    else:
        is_last = t == nlt - 1

        @pl.when(t != nlt - 1)
        def _full():
            sums_ref[0] += _colsums(y)

        @pl.when(is_last)
        def _masked():
            col = t * TL + jax.lax.broadcasted_iota(jnp.int32, y.shape, 1)
            sums_ref[0] += _colsums(jnp.where(col < L_total, y, 0.0))


# ---------------------------------------------------------------------------
# Stage 3: apply BN2 affine and write the lane-dense NCL output [y ; x].
# Grid: (N, L-tiles); pure streaming (bandwidth bound).
# ---------------------------------------------------------------------------
def _stage3_kernel(ypre_ref, x_ref, a2_ref, c2_ref, out_ref):
    cout = a2_ref.shape[0]
    y = ypre_ref[0].astype(jnp.float32) * a2_ref[...] + c2_ref[...]
    out_ref[0, :cout, :] = y.astype(out_ref.dtype)
    out_ref[0, cout:, :] = x_ref[0].astype(out_ref.dtype)


# ---------------------------------------------------------------------------
# Wrapper
# ---------------------------------------------------------------------------
def dcu2_forward(x_ncl, params, dilation=1, matmul_dtype=jnp.bfloat16,
                 out_dtype=jnp.float32, max_l_tile=None):
    """x_ncl: (N, Cin, L) as in PyTorch; returns (N, Cout + Cin, L)."""
    dilation = int(dilation)
    N, Cin, L = x_ncl.shape
    f32 = jnp.float32
    wdw = params["wdw"].astype(f32)                   # (K, Cin)
    w1 = params["w1"].astype(f32)                     # (Cin, D)
    w2 = params["w2"].astype(f32)                     # (D, Cout)
    D = w1.shape[1]
    Cout = w2.shape[1]
    inter_dtype = matmul_dtype
    pad = (dilation * (KSIZE - 1)) // 2

    xb = x_ncl.dtype.itemsize
    ib = jnp.dtype(inter_dtype).itemsize
    ob = jnp.dtype(out_dtype).itemsize

    vmem_limit, tile_budget = _vmem_caps()
    cap = int(max_l_tile) if max_l_tile is not None else _MAX_L_TILE

    vmem_spec = pl.BlockSpec(memory_space=pltpu.MemorySpace.VMEM)

    # ---- wrapper-side param prep (tiny per-channel vectors) -----------------
    # W_fused[d, k*Cin + c] = wdw[k, c] * w1[c, d]
    wft = jnp.transpose(wdw[:, :, None] * w1[None, :, :], (2, 0, 1))
    wft = wft.reshape(D, KSIZE * Cin).astype(matmul_dtype)        # (D, K*Cin)
    bdw = params["bdw"].reshape(-1)
    bf = (bdw @ w1 + params["b1"].reshape(-1)).reshape(D, 1).astype(f32)

    # ---- stage 1: grid (N, L-tiles) with halo -------------------------------
    pc1 = int(1.5 * (3 * Cin * xb * 2 + 2 * D * ib
                     + (KSIZE + 2) * Cin * ib + D * (8 + ib)))
    TL1 = _pick_l_tile(L, pc1, tile_budget, cap)
    if TL1 < L and TL1 < pad:                          # tile must cover the halo
        TL1 = ((pad + _LANE - 1) // _LANE) * _LANE
        if TL1 >= L:
            TL1 = L
    nlt1 = pl.cdiv(L, TL1)
    multi1 = nlt1 > 1
    if multi1:
        assert TL1 >= pad, "stage-1 L tile must cover the conv halo"

    if multi1:
        x_in_specs = [
            pl.BlockSpec((1, Cin, TL1),
                         lambda n, t: (n, 0, jnp.maximum(t - 1, 0))),
            pl.BlockSpec((1, Cin, TL1), lambda n, t: (n, 0, t)),
            pl.BlockSpec((1, Cin, TL1),
                         lambda n, t: (n, 0, jnp.minimum(t + 1, nlt1 - 1))),
        ]
        x_args = [x_ncl, x_ncl, x_ncl]
    else:
        x_in_specs = [pl.BlockSpec((1, Cin, TL1), lambda n, t: (n, 0, t))]
        x_args = [x_ncl]

    cost1 = pl.CostEstimate(
        flops=int(2 * N * L * D * KSIZE * Cin + 6 * N * L * D),
        transcendentals=int(N * L * D),
        bytes_accessed=int(N * L * Cin * xb * (3 if multi1 else 1)
                           + N * L * D * ib + N * D * 8 + D * KSIZE * Cin * ib))

    h1, sums1 = pl.pallas_call(
        functools.partial(_stage1_kernel, dilation, L, multi1),
        grid=(N, nlt1),
        in_specs=x_in_specs + [vmem_spec, vmem_spec],
        out_specs=(
            pl.BlockSpec((1, D, TL1), lambda n, t: (n, 0, t)),
            pl.BlockSpec((1, D, 2), lambda n, t: (n, 0, 0)),   # resident accum
        ),
        out_shape=(
            jax.ShapeDtypeStruct((N, D, L), inter_dtype),
            jax.ShapeDtypeStruct((N, D, 2), f32),
        ),
        compiler_params=pltpu.CompilerParams(
            dimension_semantics=("parallel", "arbitrary"),
            vmem_limit_bytes=vmem_limit),
        cost_estimate=cost1,
    )(*x_args, wft, bf)

    # ---- BN1 stats; fold BN1 affine + depthwise-1x1 into the 2nd matmul -----
    cnt = float(N * L)
    tot1 = jnp.sum(sums1, axis=0)                      # (D, 2)
    mean1 = tot1[:, 0] / cnt
    var1 = jnp.maximum(tot1[:, 1] / cnt - mean1 * mean1, 0.0)
    rstd1 = jax.lax.rsqrt(var1 + BN_EPS)
    g1 = params["g1"].reshape(-1)
    be1 = params["be1"].reshape(-1)
    wdw2 = params["wdw2"].reshape(-1)
    bdw2 = params["bdw2"].reshape(-1)
    a1 = rstd1 * g1 * wdw2
    c1 = (be1 - mean1 * rstd1 * g1) * wdw2 + bdw2
    w2t = (w2 * a1[:, None]).T.astype(matmul_dtype)    # (Cout, D)
    b2p = (c1 @ w2 + params["b2"].reshape(-1)).reshape(Cout, 1).astype(f32)

    # ---- stage 2: grid (N, L-tiles) ------------------------------------------
    pc2 = int(1.5 * (3 * D * ib + 2 * Cout * ib + 12 * Cout))
    TL2 = _pick_l_tile(L, pc2, tile_budget, cap)
    nlt2 = pl.cdiv(L, TL2)
    cost2 = pl.CostEstimate(
        flops=int(2 * N * L * Cout * D + 6 * N * L * Cout),
        transcendentals=int(N * L * Cout),
        bytes_accessed=int(N * L * (D + Cout) * ib + N * Cout * 8
                           + Cout * D * ib))

    ypre, sums2 = pl.pallas_call(
        functools.partial(_stage2_kernel, L),
        grid=(N, nlt2),
        in_specs=[pl.BlockSpec((1, D, TL2), lambda n, t: (n, 0, t)),
                  vmem_spec, vmem_spec],
        out_specs=(
            pl.BlockSpec((1, Cout, TL2), lambda n, t: (n, 0, t)),
            pl.BlockSpec((1, Cout, 2), lambda n, t: (n, 0, 0)),  # resident accum
        ),
        out_shape=(
            jax.ShapeDtypeStruct((N, Cout, L), inter_dtype),
            jax.ShapeDtypeStruct((N, Cout, 2), f32),
        ),
        compiler_params=pltpu.CompilerParams(
            dimension_semantics=("parallel", "arbitrary"),
            vmem_limit_bytes=vmem_limit),
        cost_estimate=cost2,
    )(h1, w2t, b2p)

    # ---- BN2 stats -----------------------------------------------------------
    tot2 = jnp.sum(sums2, axis=0)                      # (Cout, 2)
    mean2 = tot2[:, 0] / cnt
    var2 = jnp.maximum(tot2[:, 1] / cnt - mean2 * mean2, 0.0)
    rstd2 = jax.lax.rsqrt(var2 + BN_EPS)
    g2 = params["g2"].reshape(-1)
    be2 = params["be2"].reshape(-1)
    a2 = (rstd2 * g2).reshape(Cout, 1).astype(f32)
    c2 = (be2 - mean2 * rstd2 * g2).reshape(Cout, 1).astype(f32)

    # ---- stage 3: apply BN2 + lane-dense NCL output [y ; x] ------------------
    pc3 = int(1.5 * (2 * Cout * ib + 2 * Cin * xb
                     + 2 * (Cout + Cin) * ob + 8 * Cout))
    TL3 = _pick_l_tile(L, pc3, tile_budget, cap)
    nlt3 = pl.cdiv(L, TL3)
    cost3 = pl.CostEstimate(
        flops=int(2 * N * L * Cout),
        transcendentals=0,
        bytes_accessed=int(N * L * (Cout * ib + Cin * xb + (Cout + Cin) * ob)))

    out = pl.pallas_call(
        _stage3_kernel,
        grid=(N, nlt3),
        in_specs=[pl.BlockSpec((1, Cout, TL3), lambda n, t: (n, 0, t)),
                  pl.BlockSpec((1, Cin, TL3), lambda n, t: (n, 0, t)),
                  vmem_spec, vmem_spec],
        out_specs=pl.BlockSpec((1, Cout + Cin, TL3), lambda n, t: (n, 0, t)),
        out_shape=jax.ShapeDtypeStruct((N, Cout + Cin, L), out_dtype),
        compiler_params=pltpu.CompilerParams(
            dimension_semantics=("parallel", "parallel"),
            vmem_limit_bytes=vmem_limit),
        cost_estimate=cost3,
    )(ypre, x_ncl, a2, c2)
    return out


# ---------------------------------------------------------------------------
# Pure-JAX reference (independent of the kernels) for the correctness check.
# ---------------------------------------------------------------------------
def dcu2_reference(x_ncl, params, dilation=1):
    pad = int(0.5 * dilation * (KSIZE - 1))
    Cin = x_ncl.shape[1]
    dn = ("NCH", "OIH", "NCH")

    w_dw = jnp.transpose(params["wdw"], (1, 0))[:, None, :]       # (Cin,1,K)
    h = jax.lax.conv_general_dilated(
        x_ncl, w_dw, window_strides=(1,), padding=[(pad, pad)],
        rhs_dilation=(dilation,), feature_group_count=Cin, dimension_numbers=dn)
    h = h + params["bdw"][0][None, :, None]

    w1 = jnp.transpose(params["w1"], (1, 0))[:, :, None]           # (4C,Cin,1)
    h = jax.lax.conv_general_dilated(h, w1, (1,), [(0, 0)], dimension_numbers=dn)
    h = _selu(h + params["b1"][0][None, :, None])
    mean = jnp.mean(h, axis=(0, 2), keepdims=True)
    var = jnp.mean((h - mean) ** 2, axis=(0, 2), keepdims=True)
    h = (h - mean) / jnp.sqrt(var + BN_EPS) * params["g1"][0][None, :, None] \
        + params["be1"][0][None, :, None]

    h = h * params["wdw2"][0][None, :, None] + params["bdw2"][0][None, :, None]

    w2 = jnp.transpose(params["w2"], (1, 0))[:, :, None]           # (Cout,4C,1)
    h = jax.lax.conv_general_dilated(h, w2, (1,), [(0, 0)], dimension_numbers=dn)
    h = _selu(h + params["b2"][0][None, :, None])
    mean = jnp.mean(h, axis=(0, 2), keepdims=True)
    var = jnp.mean((h - mean) ** 2, axis=(0, 2), keepdims=True)
    h = (h - mean) / jnp.sqrt(var + BN_EPS) * params["g2"][0][None, :, None] \
        + params["be2"][0][None, :, None]

    return jnp.concatenate([h, x_ncl], axis=1)


def init_params(key, Cin, Cout):
    D = 4 * Cout
    ks = jax.random.split(key, 6)
    s = 0.1
    return dict(
        wdw=s * jax.random.normal(ks[0], (KSIZE, Cin), jnp.float32),   # depthwise k=25
        bdw=s * jax.random.normal(ks[1], (1, Cin), jnp.float32),
        w1=s * jax.random.normal(ks[2], (Cin, D), jnp.float32),        # 1x1: Cin -> 4*Cout
        b1=s * jax.random.normal(ks[3], (1, D), jnp.float32),
        g1=jnp.ones((1, D), jnp.float32),
        be1=jnp.zeros((1, D), jnp.float32),
        wdw2=s * jax.random.normal(ks[4], (1, D), jnp.float32),        # depthwise 1x1
        bdw2=jnp.zeros((1, D), jnp.float32),
        w2=s * jax.random.normal(ks[5], (D, Cout), jnp.float32),       # 1x1: 4*Cout -> Cout
        b2=jnp.zeros((1, Cout), jnp.float32),
        g2=jnp.ones((1, Cout), jnp.float32),
        be2=jnp.zeros((1, Cout), jnp.float32),
    )


if __name__ == "__main__":
    key = jax.random.PRNGKey(0)
    kx, kp, kx2 = jax.random.split(key, 3)

    # Small shapes consistent with the module.
    N, Cin, L, Cout = 2, 4, 16, 8
    x = jax.random.normal(kx, (N, Cin, L), jnp.float32)
    params = init_params(kp, Cin, Cout)

    # f32 matmul path, single L tile: tight check against the pure-JAX ref.
    y32 = jax.block_until_ready(
        dcu2_forward(x, params, dilation=1, matmul_dtype=jnp.float32))
    assert y32.shape == (N, Cout + Cin, L), y32.shape
    y_ref = dcu2_reference(x, params, dilation=1)
    assert jnp.allclose(y32, y_ref, atol=2e-3, rtol=2e-3), \
        float(jnp.max(jnp.abs(y32 - y_ref)))

    # Multi L-tile path: exercises the halo blocks, ragged last tile and the
    # resident BN-sum accumulators (tile override keeps shapes small).
    L2 = 320
    x2 = jax.random.normal(kx2, (N, Cin, L2), jnp.float32)
    for dil in (1, 2):
        y32b = jax.block_until_ready(
            dcu2_forward(x2, params, dilation=dil, matmul_dtype=jnp.float32,
                         max_l_tile=128))
        y_refb = dcu2_reference(x2, params, dilation=dil)
        assert y32b.shape == (N, Cout + Cin, L2), y32b.shape
        assert jnp.allclose(y32b, y_refb, atol=2e-3, rtol=2e-3), \
            (dil, float(jnp.max(jnp.abs(y32b - y_refb))))

    # Default bf16-matmul path: loose check, same semantics.
    ybf = jax.block_until_ready(
        dcu2_forward(x2, params, dilation=1, max_l_tile=128))
    y_refb = dcu2_reference(x2, params, dilation=1)
    assert ybf.shape == (N, Cout + Cin, L2), ybf.shape
    assert jnp.allclose(ybf, y_refb, atol=1.5e-1, rtol=1.5e-1), \
        float(jnp.max(jnp.abs(ybf - y_refb)))

    print("KERNEL_OK")
</pallas_src>

<mosaic_0001>
module attributes {stable_mosaic.version = 11 : i64} {
  func.func @_stage1_kernel(%arg0: i32, %arg1: i32, %arg2: memref<1x4x16xf32, #tpu.memory_space<vmem>>, %arg3: memref<32x100xf32, #tpu.memory_space<vmem>>, %arg4: memref<32x1xf32, #tpu.memory_space<vmem>>, %arg5: memref<1x32x16xf32, #tpu.memory_space<vmem>>, %arg6: memref<1x32x2xf32, #tpu.memory_space<vmem>>) attributes {dimension_semantics = [#tpu.dimension_semantics<parallel>, #tpu.dimension_semantics<arbitrary>], iteration_bounds = array<i64: 2, 1>, scalar_prefetch = 0 : i64, scratch_operands = 0 : i64, tpu.core_type = #tpu.core_type<tc>, window_params = [{transform_indices = @transform_0, window_bounds = array<i64: 1, 4, 16>}, {pipeline_mode = #tpu.pipeline_mode<synchronous>, transform_indices = @transform_1, window_bounds = array<i64: 32, 100>}, {pipeline_mode = #tpu.pipeline_mode<synchronous>, transform_indices = @transform_2, window_bounds = array<i64: 32, 1>}, {transform_indices = @transform_3, window_bounds = array<i64: 1, 32, 16>}, {transform_indices = @transform_4, window_bounds = array<i64: 1, 32, 2>}]} {
    %c0 = arith.constant 0 : index
    %c0_0 = arith.constant 0 : index
    %c0_1 = arith.constant 0 : index
    %0 = vector.load %arg2[%c0, %c0_0, %c0_1] : memref<1x4x16xf32, #tpu.memory_space<vmem>>, vector<1x4x16xf32>
    %1 = vector.shape_cast %0 : vector<1x4x16xf32> to vector<4x16xf32>
    %cst = arith.constant 0.000000e+00 : f32
    %2 = vector.broadcast %cst : f32 to vector<4x12xf32>
    %cst_2 = arith.constant 0.000000e+00 : f32
    %3 = vector.broadcast %cst_2 : f32 to vector<4x12xf32>
    %4 = tpu.concatenate %2, %1, %3 in 1 : vector<4x12xf32>, vector<4x16xf32>, vector<4x12xf32> -> vector<4x40xf32>
    %5 = vector.extract_strided_slice %4 {offsets = [0, 0], sizes = [4, 16], strides = [1, 1]} : vector<4x40xf32> to vector<4x16xf32>
    %6 = vector.extract_strided_slice %4 {offsets = [0, 1], sizes = [4, 16], strides = [1, 1]} : vector<4x40xf32> to vector<4x16xf32>
    %7 = vector.extract_strided_slice %4 {offsets = [0, 2], sizes = [4, 16], strides = [1, 1]} : vector<4x40xf32> to vector<4x16xf32>
    %8 = vector.extract_strided_slice %4 {offsets = [0, 3], sizes = [4, 16], strides = [1, 1]} : vector<4x40xf32> to vector<4x16xf32>
    %9 = vector.extract_strided_slice %4 {offsets = [0, 4], sizes = [4, 16], strides = [1, 1]} : vector<4x40xf32> to vector<4x16xf32>
    %10 = vector.extract_strided_slice %4 {offsets = [0, 5], sizes = [4, 16], strides = [1, 1]} : vector<4x40xf32> to vector<4x16xf32>
    %11 = vector.extract_strided_slice %4 {offsets = [0, 6], sizes = [4, 16], strides = [1, 1]} : vector<4x40xf32> to vector<4x16xf32>
    %12 = vector.extract_strided_slice %4 {offsets = [0, 7], sizes = [4, 16], strides = [1, 1]} : vector<4x40xf32> to vector<4x16xf32>
    %13 = vector.extract_strided_slice %4 {offsets = [0, 8], sizes = [4, 16], strides = [1, 1]} : vector<4x40xf32> to vector<4x16xf32>
    %14 = vector.extract_strided_slice %4 {offsets = [0, 9], sizes = [4, 16], strides = [1, 1]} : vector<4x40xf32> to vector<4x16xf32>
    %15 = vector.extract_strided_slice %4 {offsets = [0, 10], sizes = [4, 16], strides = [1, 1]} : vector<4x40xf32> to vector<4x16xf32>
    %16 = vector.extract_strided_slice %4 {offsets = [0, 11], sizes = [4, 16], strides = [1, 1]} : vector<4x40xf32> to vector<4x16xf32>
    %17 = vector.extract_strided_slice %4 {offsets = [0, 12], sizes = [4, 16], strides = [1, 1]} : vector<4x40xf32> to vector<4x16xf32>
    %18 = vector.extract_strided_slice %4 {offsets = [0, 13], sizes = [4, 16], strides = [1, 1]} : vector<4x40xf32> to vector<4x16xf32>
    %19 = vector.extract_strided_slice %4 {offsets = [0, 14], sizes = [4, 16], strides = [1, 1]} : vector<4x40xf32> to vector<4x16xf32>
    %20 = vector.extract_strided_slice %4 {offsets = [0, 15], sizes = [4, 16], strides = [1, 1]} : vector<4x40xf32> to vector<4x16xf32>
    %21 = vector.extract_strided_slice %4 {offsets = [0, 16], sizes = [4, 16], strides = [1, 1]} : vector<4x40xf32> to vector<4x16xf32>
    %22 = vector.extract_strided_slice %4 {offsets = [0, 17], sizes = [4, 16], strides = [1, 1]} : vector<4x40xf32> to vector<4x16xf32>
    %23 = vector.extract_strided_slice %4 {offsets = [0, 18], sizes = [4, 16], strides = [1, 1]} : vector<4x40xf32> to vector<4x16xf32>
    %24 = vector.extract_strided_slice %4 {offsets = [0, 19], sizes = [4, 16], strides = [1, 1]} : vector<4x40xf32> to vector<4x16xf32>
    %25 = vector.extract_strided_slice %4 {offsets = [0, 20], sizes = [4, 16], strides = [1, 1]} : vector<4x40xf32> to vector<4x16xf32>
    %26 = vector.extract_strided_slice %4 {offsets = [0, 21], sizes = [4, 16], strides = [1, 1]} : vector<4x40xf32> to vector<4x16xf32>
    %27 = vector.extract_strided_slice %4 {offsets = [0, 22], sizes = [4, 16], strides = [1, 1]} : vector<4x40xf32> to vector<4x16xf32>
    %28 = vector.extract_strided_slice %4 {offsets = [0, 23], sizes = [4, 16], strides = [1, 1]} : vector<4x40xf32> to vector<4x16xf32>
    %29 = vector.extract_strided_slice %4 {offsets = [0, 24], sizes = [4, 16], strides = [1, 1]} : vector<4x40xf32> to vector<4x16xf32>
    %30 = tpu.concatenate %5, %6, %7, %8, %9, %10, %11, %12, %13, %14, %15, %16, %17, %18, %19, %20 in 0 : vector<4x16xf32>, vector<4x16xf32>, vector<4x16xf32>, vector<4x16xf32>, vector<4x16xf32>, vector<4x16xf32>, vector<4x16xf32>, vector<4x16xf32>, vector<4x16xf32>, vector<4x16xf32>, vector<4x16xf32>, vector<4x16xf32>, vector<4x16xf32>, vector<4x16xf32>, vector<4x16xf32>, vector<4x16xf32> -> vector<64x16xf32>
    %31 = tpu.concatenate %21, %22, %23, %24, %25, %26, %27, %28, %29 in 0 : vector<4x16xf32>, vector<4x16xf32>, vector<4x16xf32>, vector<4x16xf32>, vector<4x16xf32>, vector<4x16xf32>, vector<4x16xf32>, vector<4x16xf32>, vector<4x16xf32> -> vector<36x16xf32>
    %32 = tpu.concatenate %30, %31 in 0 : vector<64x16xf32>, vector<36x16xf32> -> vector<100x16xf32>
    %c0_3 = arith.constant 0 : index
    %c0_4 = arith.constant 0 : index
    %33 = vector.load %arg3[%c0_3, %c0_4] : memref<32x100xf32, #tpu.memory_space<vmem>>, vector<32x100xf32>
    %cst_5 = arith.constant dense<0.000000e+00> : vector<32x16xf32>
    %34 = tpu.matmul %33, %32, %cst_5 {dimension_numbers = #tpu.dot_dimension_numbers<[1], [0], [0], [1], [0, 0, 1, 1], [], []>} : vector<32x100xf32>, vector<100x16xf32>, vector<32x16xf32> -> vector<32x16xf32>
    %c0_6 = arith.constant 0 : index
    %c0_7 = arith.constant 0 : index
    %35 = vector.load %arg4[%c0_6, %c0_7] : memref<32x1xf32, #tpu.memory_space<vmem>>, vector<32x1xf32>
    %36 = vector.broadcast %35 : vector<32x1xf32> to vector<32x16xf32>
    %37 = arith.addf %34, %36 : vector<32x16xf32>
    %cst_8 = arith.constant 0.000000e+00 : f32
    %38 = vector.broadcast %cst_8 : f32 to vector<32x16xf32>
    %39 = arith.minimumf %37, %38 : vector<32x16xf32>
    %40 = math.exp %39 : vector<32x16xf32>
    %cst_9 = arith.constant 1.000000e+00 : f32
    %41 = vector.broadcast %cst_9 : f32 to vector<32x16xf32>
    %42 = arith.subf %40, %41 : vector<32x16xf32>
    %cst_10 = arith.constant 1.67326319 : f32
    %43 = vector.broadcast %cst_10 : f32 to vector<32x16xf32>
    %44 = arith.mulf %43, %42 : vector<32x16xf32>
    %cst_11 = arith.constant 0.000000e+00 : f32
    %45 = vector.broadcast %cst_11 : f32 to vector<32x16xf32>
    %46 = arith.cmpf ogt, %37, %45 : vector<32x16xf32>
    %47 = arith.select %46, %37, %44 : vector<32x16xi1>, vector<32x16xf32>
    %cst_12 = arith.constant 1.05070102 : f32
    %48 = vector.broadcast %cst_12 : f32 to vector<32x16xf32>
    %49 = arith.mulf %48, %47 : vector<32x16xf32>
    %c0_13 = arith.constant 0 : index
    %c0_14 = arith.constant 0 : index
    %c0_15 = arith.constant 0 : index
    %50 = vector.load %arg5[%c0_13, %c0_14, %c0_15] : memref<1x32x16xf32, #tpu.memory_space<vmem>>, vector<1x32x16xf32>
    %51 = vector.shape_cast %50 : vector<1x32x16xf32> to vector<32x16xf32>
    %52 = vector.shape_cast %49 : vector<32x16xf32> to vector<1x32x16xf32>
    tpu.vector_store %arg5[%c0_13, %c0_14, %c0_15], %52 {strides = array<i32>} : memref<1x32x16xf32, #tpu.memory_space<vmem>>, vector<1x32x16xf32>,
    %c0_i32 = arith.constant 0 : i32
    %53 = arith.cmpi eq, %arg1, %c0_i32 : i32
    %54 = arith.extui %53 : i1 to i32
    %c0_i32_16 = arith.constant 0 : i32
    %55 = arith.cmpi ne, %54, %c0_i32_16 : i32
    scf.if %55 {
      %cst_25 = arith.constant 0.000000e+00 : f32
      %68 = vector.broadcast %cst_25 : f32 to vector<32x2xf32>
      %c0_26 = arith.constant 0 : index
      %c0_27 = arith.constant 0 : index
      %c0_28 = arith.constant 0 : index
      %69 = vector.load %arg6[%c0_26, %c0_27, %c0_28] : memref<1x32x2xf32, #tpu.memory_space<vmem>>, vector<1x32x2xf32>
      %70 = vector.shape_cast %69 : vector<1x32x2xf32> to vector<32x2xf32>
      %71 = vector.shape_cast %68 : vector<32x2xf32> to vector<1x32x2xf32>
      tpu.vector_store %arg6[%c0_26, %c0_27, %c0_28], %71 {strides = array<i32>} : memref<1x32x2xf32, #tpu.memory_space<vmem>>, vector<1x32x2xf32>,
    } else {
    }
    %c0_17 = arith.constant 0 : index
    %c0_18 = arith.constant 0 : index
    %c0_19 = arith.constant 0 : index
    %56 = vector.load %arg6[%c0_17, %c0_18, %c0_19] : memref<1x32x2xf32, #tpu.memory_space<vmem>>, vector<1x32x2xf32>
    %57 = vector.shape_cast %56 : vector<1x32x2xf32> to vector<32x2xf32>
    %cst_20 = arith.constant dense<0.000000e+00> : vector<32xf32>
    %58 = vector.multi_reduction <add>, %49, %cst_20 [1] : vector<32x16xf32> to vector<32xf32>
    %59 = vector.shape_cast %58 : vector<32xf32> to vector<32x1xf32>
    %60 = arith.mulf %49, %49 : vector<32x16xf32>
    %cst_21 = arith.constant dense<0.000000e+00> : vector<32xf32>
    %61 = vector.multi_reduction <add>, %60, %cst_21 [1] : vector<32x16xf32> to vector<32xf32>
    %62 = vector.shape_cast %61 : vector<32xf32> to vector<32x1xf32>
    %63 = tpu.concatenate %59, %62 in 1 : vector<32x1xf32>, vector<32x1xf32> -> vector<32x2xf32>
    %64 = arith.addf %57, %63 : vector<32x2xf32>
    %c0_22 = arith.constant 0 : index
    %c0_23 = arith.constant 0 : index
    %c0_24 = arith.constant 0 : index
    %65 = vector.load %arg6[%c0_22, %c0_23, %c0_24] : memref<1x32x2xf32, #tpu.memory_space<vmem>>, vector<1x32x2xf32>
    %66 = vector.shape_cast %65 : vector<1x32x2xf32> to vector<32x2xf32>
    %67 = vector.shape_cast %64 : vector<32x2xf32> to vector<1x32x2xf32>
    tpu.vector_store %arg6[%c0_22, %c0_23, %c0_24], %67 {strides = array<i32>} : memref<1x32x2xf32, #tpu.memory_space<vmem>>, vector<1x32x2xf32>,
    return
  }
  func.func @transform_0(%arg0: i32, %arg1: i32) -> (i32, i32, i32) {
    %c0_i32 = arith.constant 0 : i32
    %c0_i32_0 = arith.constant 0 : i32
    return %arg0, %c0_i32, %arg1 : i32, i32, i32
  }
  func.func @transform_1(%arg0: i32, %arg1: i32) -> (i32, i32) {
    %c0_i32 = arith.constant 0 : i32
    %c0_i32_0 = arith.constant 0 : i32
    %c0_i32_1 = arith.constant 0 : i32
    return %c0_i32, %c0_i32_0 : i32, i32
  }
  func.func @transform_2(%arg0: i32, %arg1: i32) -> (i32, i32) {
    %c0_i32 = arith.constant 0 : i32
    %c0_i32_0 = arith.constant 0 : i32
    %c0_i32_1 = arith.constant 0 : i32
    return %c0_i32, %c0_i32_0 : i32, i32
  }
  func.func @transform_3(%arg0: i32, %arg1: i32) -> (i32, i32, i32) {
    %c0_i32 = arith.constant 0 : i32
    %c0_i32_0 = arith.constant 0 : i32
    return %arg0, %c0_i32, %arg1 : i32, i32, i32
  }
  func.func @transform_4(%arg0: i32, %arg1: i32) -> (i32, i32, i32) {
    %c0_i32 = arith.constant 0 : i32
    %c0_i32_0 = arith.constant 0 : i32
    %c0_i32_1 = arith.constant 0 : i32
    return %arg0, %c0_i32, %c0_i32_0 : i32, i32, i32
  }
}

</mosaic_0001>

<llo_original>
// kernel: tpu_custom_call.1
$region0: #{tpu_custom_call.1}
  #allocation0 [shape = 'u32[]', space=smem, size = 0x4, offset = 0x4, fixed_abs, tag = 'smem constant byte address 0x4 - core index']
  #allocation1 [shape = 'u32[144,128]{1,0:T(1,128)}', space=vmem, size = 0x12000, scoped, tag = 'internal scratch']
  %s0 = inlined_call_operand.hbm [shape: f32[2,4,16], index: 0, kind: input, shape index: {}]
  %s1 = inlined_call_operand.vmem [shape: f32[32,100], index: 1, kind: input, shape index: {}]
  %s2 = inlined_call_operand.vmem [shape: f32[32,1], index: 2, kind: input, shape index: {}]
  %s3 = inlined_call_operand.vmem [shape: f32[2,32,16], index: 3, kind: output, shape index: {0}]
  %s4 = inlined_call_operand.vmem [shape: f32[2,32,2], index: 4, kind: output, shape index: {1}]
  %5 = xla_tuple %s3, %s4
  %s6 = sld [smem:[#allocation0]]
  $region61: #{tpu_custom_call.1} parent=0
    _
  %s8 = ssub.s32 1, %s6
  %s9 = scalar_select 0, %s8, %s6
  $region1: #{tpu_custom_call.1} parent=0
    #allocation2 [shape = 'u8[4096]{0}', space=vmem, size = 0x1000, scoped, tag = 'input window, operand 0']
    #allocation3 [shape = 's32[2]{0}', space=sflag, size = 0x8, scoped, tag = 'scoped memory for tpu_custom_call.1']
    %10 = vsyncpa [#allocation3], 0
    %s11 = scalar_lea.sflag [#allocation3], 1
    %12 = vsyncpa %s11, 0
    loop: start=0, step=1, limit=4
    $region2: #{tpu_custom_call.1} parent=1 // loop_pre_header
      _
    $region3: #{tpu_custom_call.1} parent=1 // loop_header
      %s14 = sphi 0, %s18
      %p15 = scmp.ge.s32.totalorder %s14, 4
      %s21 = sphi 0, %s33
      %s22 = sphi 0, %s29
      %s23 = sphi 0, %s21
      %s24 = sphi 0, %s22
      %s25 = sphi 0, %s23
      %s26 = sphi 0, %s24
      %s38 = sphi 0, %s40
      %s41 = sphi 0, %s38
      %s42 = sphi 0, %s41
      %s58 = sphi 0, %s42
      %s62 = sphi 0, %s62
      %s64 = sphi 0, %s62
      %s65 = sphi 0, %s64
      %s79 = sphi 0, %s65
      %s83 = sphi 0, %s83
      %s85 = sphi 0, %s83
      %s86 = sphi 0, %s85
      %s100 = sphi 0, %s86
      %s108 = sphi 0, %s110
      %s111 = sphi 0, %s108
      %s112 = sphi 0, %s111
      %s128 = sphi 0, %s112
      %s134 = sphi 0, %s136
      %s137 = sphi 0, %s134
      %s138 = sphi 0, %s137
      %s154 = sphi 0, %s138
    $region4: #{tpu_custom_call.1} parent=1 // loop_header_branch
      %17 = sbr.rel (%p15) target = $region8
    $region5: #{tpu_custom_call.1} parent=1 // loop_body
      %s19 = ssub.s32 %s14, 1
      %s20 = ssub.s32 %s14, 2
      %s27 = sadd.s32 1, %s22
      %p28 = scmp.ge.s32.totalorder %s27, 1
      %s29 = scalar_select %p28, 0, %s27
      %s30 = sadd.s32 1, %s21
      %s31 = scalar_select %p28, %s30, %s21
      %p32 = scmp.ge.s32.totalorder %s31, 2
      %s33 = scalar_select %p32, 0, %s31
      %s34 = ssub.s32 %s21, %s33
      %s35 = ssub.s32 %s22, %s29
      %s36 = sor.u32 %s34, %s35
      %p37 = scmp.eq.s32.totalorder %s36, 0
      %s39 = sadd.s32 %s38, 1
      %s40 = scalar_select %p37, %s38, %s39
      %p43 = pneg %p37
      %p44 = scmp.eq.s32.totalorder %s14, 1
      %p45 = por %p43, %p44
      %p46 = scmp.ne.s32.totalorder %s38, %s41
      %p47 = scmp.eq.s32.totalorder %s14, 0
      %p48 = por %p46, %p47
      %p49 = scmp.ne.s32.totalorder %s38, %s41
      %p50 = scmp.eq.s32.totalorder %s19, 1
      %p51 = por %p49, %p50
      %p52 = scmp.ne.s32.totalorder %s41, %s42
      %p53 = scmp.eq.s32.totalorder %s19, 0
      %p54 = por %p52, %p53
      %p55 = scmp.ne.s32.totalorder %s41, %s42
      %p56 = scmp.eq.s32.totalorder %s20, 1
      %p57 = por %p55, %p56
      %p59 = scmp.ne.s32.totalorder %s42, %s58
      %p60 = scmp.eq.s32.totalorder %s20, 0
      %p61 = por %p59, %p60
      %s63 = sadd.s32 %s62, 1
      %p66 = scmp.eq.s32.totalorder %s14, 1
      %p67 = scmp.ne.s32.totalorder %s62, %s64
      %p68 = scmp.eq.s32.totalorder %s14, 0
      %p69 = por %p67, %p68
      %p70 = scmp.ne.s32.totalorder %s62, %s64
      %p71 = scmp.eq.s32.totalorder %s19, 1
      %p72 = por %p70, %p71
      %p73 = scmp.ne.s32.totalorder %s64, %s65
      %p74 = scmp.eq.s32.totalorder %s19, 0
      %p75 = por %p73, %p74
      %p76 = scmp.ne.s32.totalorder %s64, %s65
      %p77 = scmp.eq.s32.totalorder %s20, 1
      %p78 = por %p76, %p77
      %p80 = scmp.ne.s32.totalorder %s65, %s79
      %p81 = scmp.eq.s32.totalorder %s20, 0
      %p82 = por %p80, %p81
      %s84 = sadd.s32 %s83, 1
      %p87 = scmp.eq.s32.totalorder %s14, 1
      %p88 = scmp.ne.s32.totalorder %s83, %s85
      %p89 = scmp.eq.s32.totalorder %s14, 0
      %p90 = por %p88, %p89
      %p91 = scmp.ne.s32.totalorder %s83, %s85
      %p92 = scmp.eq.s32.totalorder %s19, 1
      %p93 = por %p91, %p92
      %p94 = scmp.ne.s32.totalorder %s85, %s86
      %p95 = scmp.eq.s32.totalorder %s19, 0
      %p96 = por %p94, %p95
      %p97 = scmp.ne.s32.totalorder %s85, %s86
      %p98 = scmp.eq.s32.totalorder %s20, 1
      %p99 = por %p97, %p98
      %p101 = scmp.ne.s32.totalorder %s86, %s100
      %p102 = scmp.eq.s32.totalorder %s20, 0
      %p103 = por %p101, %p102
      %s104 = ssub.s32 %s21, %s33
      %s105 = ssub.s32 %s22, %s29
      %s106 = sor.u32 %s104, %s105
      %p107 = scmp.eq.s32.totalorder %s106, 0
      %s109 = sadd.s32 %s108, 1
      %s110 = scalar_select %p107, %s108, %s109
      %p113 = pneg %p107
      %p114 = scmp.eq.s32.totalorder %s14, 1
      %p115 = por %p113, %p114
      %p116 = scmp.ne.s32.totalorder %s108, %s111
      %p117 = scmp.eq.s32.totalorder %s14, 0
      %p118 = por %p116, %p117
      %p119 = scmp.ne.s32.totalorder %s108, %s111
      %p120 = scmp.eq.s32.totalorder %s19, 1
      %p121 = por %p119, %p120
      %p122 = scmp.ne.s32.totalorder %s111, %s112
      %p123 = scmp.eq.s32.totalorder %s19, 0
      %p124 = por %p122, %p123
      %p125 = scmp.ne.s32.totalorder %s111, %s112
      %p126 = scmp.eq.s32.totalorder %s20, 1
      %p127 = por %p125, %p126
      %p129 = scmp.ne.s32.totalorder %s112, %s128
      %p130 = scmp.eq.s32.totalorder %s20, 0
      %p131 = por %p129, %p130
      %s132 = ssub.s32 %s21, %s33
      %p133 = scmp.eq.s32.totalorder %s132, 0
      %s135 = sadd.s32 %s134, 1
      %s136 = scalar_select %p133, %s134, %s135
      %p139 = pneg %p133
      %p140 = scmp.eq.s32.totalorder %s14, 1
      %p141 = por %p139, %p140
      %p142 = scmp.ne.s32.totalorder %s134, %s137
      %p143 = scmp.eq.s32.totalorder %s14, 0
      %p144 = por %p142, %p143
      %p145 = scmp.ne.s32.totalorder %s134, %s137
      %p146 = scmp.eq.s32.totalorder %s19, 1
      %p147 = por %p145, %p146
      %p148 = scmp.ne.s32.totalorder %s137, %s138
      %p149 = scmp.eq.s32.totalorder %s19, 0
      %p150 = por %p148, %p149
      %p151 = scmp.ne.s32.totalorder %s137, %s138
      %p152 = scmp.eq.s32.totalorder %s20, 1
      %p153 = por %p151, %p152
      %p155 = scmp.ne.s32.totalorder %s138, %s154
      %p156 = scmp.eq.s32.totalorder %s20, 0
      %p157 = por %p155, %p156
      %p158 = scmp.le.s32.totalorder 1, %s14
      %p159 = scmp.lt.s32.totalorder %s14, 3
      %p160 = pnand %p158, %p159
      %p161 = pneg %p160
      // Predicated region
      $region9: #{tpu_custom_call.1} parent=5 // pred_check
        _
      $region10: #{tpu_custom_call.1} parent=5 // pred_check_branch
        %163 = sbr.rel (%p160) target = $region12
      $region11: #{tpu_custom_call.1} parent=5 // pred_region
        %s164 = ssub.s32 %s14, 1
        // Predicated region
        $region13: #{tpu_custom_call.1} parent=11 // pred_check
          %p165 = pneg %p75
        $region14: #{tpu_custom_call.1} parent=11 // pred_check_branch
          %167 = sbr.rel (%p165) target = $region16
        $region15: #{tpu_custom_call.1} parent=11 // pred_region
          _
        $region16: #{tpu_custom_call.1} parent=11 // pred_fallthru
          _
        // Predicated region
        $region17: #{tpu_custom_call.1} parent=11 // pred_check
          %p168 = pneg %p96
        $region18: #{tpu_custom_call.1} parent=11 // pred_check_branch
          %170 = sbr.rel (%p168) target = $region20
        $region19: #{tpu_custom_call.1} parent=11 // pred_region
          _
        $region20: #{tpu_custom_call.1} parent=11 // pred_fallthru
          _
      $region12: #{tpu_custom_call.1} parent=5 // pred_fallthru
        _
      %p171 = scmp.lt.s32.totalorder %s14, 2
      // Predicated region
      $region21: #{tpu_custom_call.1} parent=5 // pred_check
        %p172 = pneg %p171
      $region22: #{tpu_custom_call.1} parent=5 // pred_check_branch
        %174 = sbr.rel (%p172) target = $region24
      $region23: #{tpu_custom_call.1} parent=5 // pred_region
        // Predicated region
        $region25: #{tpu_custom_call.1} parent=23 // pred_check
          %p175 = pneg %p48
        $region26: #{tpu_custom_call.1} parent=23 // pred_check_branch
          %177 = sbr.rel (%p175) target = $region28
        $region27: #{tpu_custom_call.1} parent=23 // pred_region
          %s178 = sand.u32 %s38, 1
          %s179 = scalar_lea.sflag [#allocation3], %s178
          %s180 = sand.u32 %s38, 1
          %s181 = smul.addr %s180, 4
          %s182 = scalar_lea.vmem [#allocation2], %s181
          %s184 = ssub.s32 64, 64
          %185 = vsyncadd %s179, %s184
          %s186 = sadd.s32 %s22, %s21
          %s187 = smul.addr %s186, 64
          %s188 = scalar_lea.hbm %s0, %s187
          %s190 = sshll.u32 %s182, 4
          %s191 = int_to_ptr.vmem [resolvable:$true] %s190
          %193 = dma.hbm_to_vmem [thread:$0]  %s188, 64, %s191, %s179
        $region28: #{tpu_custom_call.1} parent=23 // pred_fallthru
          _
      $region24: #{tpu_custom_call.1} parent=5 // pred_fallthru
        _
      %p194 = scmp.le.s32.totalorder 1, %s14
      %p195 = scmp.lt.s32.totalorder %s14, 3
      %p196 = pnand %p194, %p195
      %p197 = pneg %p196
      // Predicated region
      $region29: #{tpu_custom_call.1} parent=5 // pred_check
        _
      $region30: #{tpu_custom_call.1} parent=5 // pred_check_branch
        %199 = sbr.rel (%p196) target = $region32
      $region31: #{tpu_custom_call.1} parent=5 // pred_region
        %s200 = ssub.s32 %s14, 1
        %s201 = sand.u32 %s41, 1
        %s202 = scalar_lea.sflag [#allocation3], %s201
        %s203 = sand.u32 %s41, 1
        %s204 = smul.addr %s203, 4
        %s205 = scalar_lea.vmem [#allocation2], %s204
        // Predicated region
        $region33: #{tpu_custom_call.1} parent=31 // pred_check
          %p206 = pneg %p54
        $region34: #{tpu_custom_call.1} parent=31 // pred_check_branch
          %208 = sbr.rel (%p206) target = $region36
        $region35: #{tpu_custom_call.1} parent=31 // pred_region
          %209 = dma.done %s202, 64
        $region36: #{tpu_custom_call.1} parent=31 // pred_fallthru
          _
        %s210 = sand.u32 %s41, 1
        %s211 = scalar_lea.sflag [#allocation3], %s210
        %s212 = sand.u32 %s41, 1
        %s213 = smul.addr %s212, 4
        %s214 = scalar_lea.vmem [#allocation2], %s213
        %p215 = pneg %p54
        %p216 = pneg %p51
        %p217 = pneg %p75
        %p218 = pneg %p72
        %p219 = pneg %p96
        %p220 = pneg %p93
        %p221 = pneg %p124
        %p222 = pneg %p121
        %p223 = scmp.lt.s32.totalorder %s23, 1
        %s224 = scalar_select %p223, %s23, 1
        %p225 = scmp.lt.s32.totalorder %s24, 0
        %s226 = scalar_select %p225, %s24, 0
        %s227 = smul.addr %s224, 4
        %s228 = sadd.s32 %s226, %s227
        %s229 = smul.addr %s228, 8
        %s230 = scalar_lea.vmem %s3, %s229
        %p231 = pneg %p150
        %p232 = pneg %p147
        %p233 = scmp.lt.s32.totalorder %s23, 1
        %s234 = scalar_select %p233, %s23, 1
        %s235 = smul.addr %s234, 4
        %s236 = smul.addr %s235, 8
        %s237 = scalar_lea.vmem %s4, %s236
        %p238 = scmp.lt.s32.totalorder %s23, 1
        %s239 = scalar_select %p238, %s23, 1
        %p240 = scmp.lt.s32.totalorder %s24, 0
        %s241 = scalar_select %p240, %s24, 0
        %s242 = smul.addr %s239, 4
        %s243 = sadd.s32 %s241, %s242
        %s244 = smul.addr %s243, 8
        %s245 = scalar_lea.vmem %s3, %s244
        %p246 = scmp.lt.s32.totalorder %s23, 1
        %s247 = scalar_select %p246, %s23, 1
        %s248 = smul.addr %s247, 4
        %s249 = smul.addr %s248, 8
        %s250 = scalar_lea.vmem %s4, %s249
        %v251 = vld [vmem:[%s205] sm:$0xf]
        %253 = vrot.lane.b32.xlu0 %v251, 12
        %v254 = vpop.permute.xlu0 %253
        %vm256 = vcmask 97280
        %v257 = vsel %vm256, 0.0, %v254
        %vm258 = vcmask 228352
        %v259 = vsel %vm258, %v257, 0.0
        %v261 = vrot.slane %v259, 4
        %262 = vrot.lane.b32.xlu0 %v261, 127
        %v263 = vpop.permute.xlu0 %262
        %265 = vrot.lane.b32.xlu0 %v259, 126
        %v266 = vpop.permute.xlu0 %265
        %268 = vrot.lane.b32.xlu0 %v261, 125
        %v269 = vpop.permute.xlu0 %268
        %271 = vrot.lane.b32.xlu0 %v259, 124
        %v272 = vpop.permute.xlu0 %271
        %274 = vrot.lane.b32.xlu0 %v261, 123
        %v275 = vpop.permute.xlu0 %274
        %277 = vrot.lane.b32.xlu0 %v259, 122
        %v278 = vpop.permute.xlu0 %277
        %280 = vrot.lane.b32.xlu0 %v261, 121
        %v281 = vpop.permute.xlu0 %280
        %283 = vrot.lane.b32.xlu0 %v259, 120
        %v284 = vpop.permute.xlu0 %283
        %286 = vrot.lane.b32.xlu0 %v261, 119
        %v287 = vpop.permute.xlu0 %286
        %289 = vrot.lane.b32.xlu0 %v259, 118
        %v290 = vpop.permute.xlu0 %289
        %292 = vrot.lane.b32.xlu0 %v261, 117
        %v293 = vpop.permute.xlu0 %292
        %295 = vrot.lane.b32.xlu0 %v259, 116
        %v296 = vpop.permute.xlu0 %295
        %298 = vrot.lane.b32.xlu0 %v261, 115
        %v299 = vpop.permute.xlu0 %298
        %301 = vrot.lane.b32.xlu0 %v259, 114
        %v302 = vpop.permute.xlu0 %301
        %304 = vrot.lane.b32.xlu0 %v261, 113
        %v305 = vpop.permute.xlu0 %304
        %vm307 = vcmask 1043456
        %v308 = vsel %vm307, %v259, %v263
        %v309 = vsel %vm307, %v266, %v269
        %v310 = vsel %vm307, %v272, %v275
        %v311 = vsel %vm307, %v278, %v281
        %v312 = vsel %vm307, %v284, %v287
        %v313 = vsel %vm307, %v290, %v293
        %v314 = vsel %vm307, %v296, %v299
        %v315 = vsel %vm307, %v302, %v305
        %320 = vrot.lane.b32.xlu0 %v308, 112
        %v321 = vpop.permute.xlu0 %320
        %322 = vrot.lane.b32.xlu0 %v309, 112
        %v323 = vpop.permute.xlu0 %322
        %324 = vrot.lane.b32.xlu0 %v310, 112
        %v325 = vpop.permute.xlu0 %324
        %326 = vrot.lane.b32.xlu0 %v311, 112
        %v327 = vpop.permute.xlu0 %326
        %328 = vrot.lane.b32.xlu0 %v284, 112
        %v329 = vpop.permute.xlu0 %328
        %v334 = vld [vmem:[%s1] sm:$0xff]
        %v335 = vld [vmem:[%s1 + $0x8] sm:$0xff]
        %v336 = vld [vmem:[%s1 + $0x10] sm:$0xff]
        %v337 = vld [vmem:[%s1 + $0x18] sm:$0xff]
        %v338 = vld [vmem:[%s2] sm:$0xff]
        %v339 = vld [vmem:[%s2 + $0x8] sm:$0xff]
        %v340 = vld [vmem:[%s2 + $0x10] sm:$0xff]
        %v341 = vld [vmem:[%s2 + $0x18] sm:$0xff]
        %343 = vset.pattern.permute.xlu0 0
        %344 = vperm.xlu0 %343, %v338
        %v345 = vpop.permute.xlu0 %344
        %348 = vset.pattern.permute.xlu0 0
        %349 = vperm.xlu0 %348, %v339
        %v350 = vpop.permute.xlu0 %349
        %353 = vset.pattern.permute.xlu0 0
        %354 = vperm.xlu0 %353, %v340
        %v355 = vpop.permute.xlu0 %354
        %358 = vset.pattern.permute.xlu0 0
        %359 = vperm.xlu0 %358, %v341
        %v360 = vpop.permute.xlu0 %359
        %vm362 = vcmask 818176
        %v364 = vsel %vm362, %v334, 0
        %v367 = vsel %vm362, %v335, 0
        %v370 = vsel %vm362, %v336, 0
        %v373 = vsel %vm362, %v337, 0
        %v375 = vsel %vm307, %v329, 0
        %377 = vmatprep.subr.mxu0 0.0
        %378 = vmatpush1.msra.mxu0 0.0
        %379 = vmatprep.subr.mxu0 0.0
        %380 = vmatpush1.msra.mxu0 0.0
        %381 = vmatprep.subr.mxu0 0.0
        %382 = vmatpush1.msra.mxu0 0.0
        %383 = vmatprep.subr.mxu0 0.0
        %384 = vmatpush1.msra.mxu0 %v375
        %385 = vmatprep.subr.mxu0 0.0
        %386 = vmatpush1.msra.mxu0 %v327
        %387 = vmatprep.subr.mxu0 0.0
        %388 = vmatpush1.msra.mxu0 %v325
        %389 = vmatprep.subr.mxu0 0.0
        %390 = vmatpush1.msra.mxu0 %v323
        %391 = vmatprep.subr.mxu0 0.0
        %392 = vmatpush1.msra.mxu0 %v321
        %393 = vmatprep.subr.mxu0 0.0
        %394 = vmatpush1.msra.mxu0 %v315
        %395 = vmatprep.subr.mxu0 0.0
        %396 = vmatpush1.msra.mxu0 %v314
        %397 = vmatprep.subr.mxu0 0.0
        %398 = vmatpush1.msra.mxu0 %v313
        %399 = vmatprep.subr.mxu0 0.0
        %400 = vmatpush1.msra.mxu0 %v312
        %401 = vmatprep.subr.mxu0 0.0
        %402 = vmatpush1.msra.mxu0 %v311
        %403 = vmatprep.subr.mxu0 0.0
        %404 = vmatpush1.msra.mxu0 %v310
        %405 = vmatprep.subr.mxu0 0.0
        %406 = vmatpush1.msra.mxu0 %v309
        %407 = vmatprep.subr.mxu0 0.0
        %408 = vmatpush1.msra.mxu0 %v308
        %409 = vmatprep.subr.mxu0 0.0
        %410 = vmatpush2.msra.mxu0 0.0
        %411 = vmatprep.subr.mxu0 0.0
        %412 = vmatpush2.msra.mxu0 0.0
        %413 = vmatprep.subr.mxu0 0.0
        %414 = vmatpush2.msra.mxu0 0.0
        %415 = vmatprep.subr.mxu0 0.0
        %416 = vmatpush2.msra.mxu0 0.0
        %417 = vmatprep.subr.mxu0 0.0
        %418 = vmatpush2.msra.mxu0 0.0
        %419 = vmatprep.subr.mxu0 0.0
        %420 = vmatpush2.msra.mxu0 0.0
        %421 = vmatprep.subr.mxu0 0.0
        %422 = vmatpush2.msra.mxu0 0.0
        %423 = vmatprep.subr.mxu0 0.0
        %424 = vmatpush2.msra.mxu0 0.0
        %425 = vmatprep.subr.mxu0 0.0
        %426 = vmatpush2.msra.mxu0 0.0
        %427 = vmatprep.subr.mxu0 0.0
        %428 = vmatpush2.msra.mxu0 0.0
        %429 = vmatprep.subr.mxu0 0.0
        %430 = vmatpush2.msra.mxu0 0.0
        %431 = vmatprep.subr.mxu0 0.0
        %432 = vmatpush2.msra.mxu0 0.0
        %433 = vmatprep.subr.mxu0 0.0
        %434 = vmatpush2.msra.mxu0 0.0
        %435 = vmatprep.subr.mxu0 0.0
        %436 = vmatpush2.msra.mxu0 0.0
        %437 = vmatprep.subr.mxu0 0.0
        %438 = vmatpush2.msra.mxu0 0.0
        %439 = vmatprep.subr.mxu0 0.0
        %440 = vmatpush2.msra.mxu0 0.0
        %441 = vmatprep.mubr.f32.mxu0 0.0
        %442 = vmatmul.mubr.f32.gmra.mxu0 %v364
        %v443 = vpop.f32.mrf.mxu0
        %v444 = vadd.f32 %v345, %v443
        %v445 = vpop.f32.mrf.mxu0
        %446 = vmatprep.mubr.f32.mxu0 0.0
        %447 = vmatmul.mubr.f32.gmra.mxu0 %v367
        %v448 = vpop.f32.mrf.mxu0
        %v449 = vadd.f32 %v350, %v448
        %v450 = vpop.f32.mrf.mxu0
        %451 = vmatprep.mubr.f32.mxu0 0.0
        %452 = vmatmul.mubr.f32.gmra.mxu0 %v370
        %v453 = vpop.f32.mrf.mxu0
        %v454 = vadd.f32 %v355, %v453
        %v455 = vpop.f32.mrf.mxu0
        %456 = vmatprep.mubr.f32.mxu0 0.0
        %457 = vmatmul.mubr.f32.gmra.mxu0 %v373
        %v458 = vpop.f32.mrf.mxu0
        %v459 = vadd.f32 %v360, %v458
        %v460 = vpop.f32.mrf.mxu0
        %461 = vdwg.mxu0
        %v462 = vmin.f32 %v444, 0.0
        %v463 = vmin.f32 %v449, 0.0
        %v464 = vmin.f32 %v454, 0.0
        %v465 = vmin.f32 %v459, 0.0
        %v466 = vmul.f32 %v462, 1.442695
        %v467 = vpow.pop %v466
        %v468 = vmul.f32 %v463, 1.442695
        %v469 = vpow.pop %v468
        %v470 = vmul.f32 %v464, 1.442695
        %v471 = vpow.pop %v470
        %v472 = vmul.f32 %v465, 1.442695
        %v473 = vpow.pop %v472
        %v474 = vsub.f32 %v467, 1.0
        %v475 = vsub.f32 %v469, 1.0
        %v476 = vsub.f32 %v471, 1.0
        %v477 = vsub.f32 %v473, 1.0
        %v478 = vmul.f32 %v474, 1.6732632
        %v479 = vmul.f32 %v475, 1.6732632
        %v480 = vmul.f32 %v476, 1.6732632
        %v481 = vmul.f32 %v477, 1.6732632
        %vm482 = vcmp.gt.f32.partialorder %v444, 0.0
        %vm483 = vcmp.gt.f32.partialorder %v449, 0.0
        %vm484 = vcmp.gt.f32.partialorder %v454, 0.0
        %vm485 = vcmp.gt.f32.partialorder %v459, 0.0
        %v486 = vsel %vm482, %v444, %v478
        %v487 = vsel %vm483, %v449, %v479
        %v488 = vsel %vm484, %v454, %v480
        %v489 = vsel %vm485, %v459, %v481
        %v490 = vmul.f32 %v486, 1.050701
        %v491 = vmul.f32 %v487, 1.050701
        %v492 = vmul.f32 %v488, 1.050701
        %v493 = vmul.f32 %v489, 1.050701
        %vm494 = vcmask 130048
        %495 = vst.msk [vmem:[%s245] sm:$0xff] %vm494, %v490
        %496 = vst.msk [vmem:[%s245 + $0x8] sm:$0xff] %vm494, %v491
        %497 = vst.msk [vmem:[%s245 + $0x10] sm:$0xff] %vm494, %v492
        %498 = vst.msk [vmem:[%s245 + $0x18] sm:$0xff] %vm494, %v493
        %p499 = scmp.eq.s32.totalorder %s24, 0
        // Predicated region
        $region37: #{tpu_custom_call.1} parent=31 // pred_check
          %p500 = pneg %p499
        $region38: #{tpu_custom_call.1} parent=31 // pred_check_branch
          %502 = sbr.rel (%p500) target = $region40
        $region39: #{tpu_custom_call.1} parent=31 // pred_region
          %vm503 = vcmask 15360
          %504 = vst.msk [vmem:[%s250] sm:$0xff] %vm503, 0.0
          %505 = vst.msk [vmem:[%s250 + $0x8] sm:$0xff] %vm503, 0.0
          %506 = vst.msk [vmem:[%s250 + $0x10] sm:$0xff] %vm503, 0.0
          %507 = vst.msk [vmem:[%s250 + $0x18] sm:$0xff] %vm503, 0.0
        $region40: #{tpu_custom_call.1} parent=31 // pred_fallthru
          _
        %v508 = vld [vmem:[%s250] sm:$0xff]
        %v509 = vld [vmem:[%s250 + $0x8] sm:$0xff]
        %v510 = vld [vmem:[%s250 + $0x10] sm:$0xff]
        %v511 = vld [vmem:[%s250 + $0x18] sm:$0xff]
        %v512 = vsel %vm494, %v490, 0.0
        %513 = vadd.xlane.f32.xlu0 %v512
        %v514 = vpop.xlane.xlu0 %513
        %v515 = vsel %vm494, %v491, 0.0
        %516 = vadd.xlane.f32.xlu0 %v515
        %v517 = vpop.xlane.xlu0 %516
        %v518 = vsel %vm494, %v492, 0.0
        %519 = vadd.xlane.f32.xlu0 %v518
        %v520 = vpop.xlane.xlu0 %519
        %v521 = vsel %vm494, %v493, 0.0
        %522 = vadd.xlane.f32.xlu0 %v521
        %v523 = vpop.xlane.xlu0 %522
        %v524 = vmul.f32 %v490, %v490
        %v525 = vmul.f32 %v491, %v491
        %v526 = vmul.f32 %v492, %v492
        %v527 = vmul.f32 %v493, %v493
        %v528 = vsel %vm494, %v524, 0.0
        %529 = vadd.xlane.f32.xlu0 %v528
        %v530 = vpop.xlane.xlu0 %529
        %v531 = vsel %vm494, %v525, 0.0
        %532 = vadd.xlane.f32.xlu0 %v531
        %v533 = vpop.xlane.xlu0 %532
        %v534 = vsel %vm494, %v526, 0.0
        %535 = vadd.xlane.f32.xlu0 %v534
        %v536 = vpop.xlane.xlu0 %535
        %v537 = vsel %vm494, %v527, 0.0
        %538 = vadd.xlane.f32.xlu0 %v537
        %v539 = vpop.xlane.xlu0 %538
        %vm540 = vcmask 7168
        %v541 = vsel %vm540, %v514, %v530
        %v542 = vsel %vm540, %v517, %v533
        %v543 = vsel %vm540, %v520, %v536
        %v544 = vsel %vm540, %v523, %v539
        %v545 = vadd.f32 %v508, %v541
        %v546 = vadd.f32 %v509, %v542
        %v547 = vadd.f32 %v510, %v543
        %v548 = vadd.f32 %v511, %v544
        %vm549 = vcmask 15360
        %550 = vst.msk [vmem:[%s250] sm:$0xff] %vm549, %v545
        %551 = vst.msk [vmem:[%s250 + $0x8] sm:$0xff] %vm549, %v546
        %552 = vst.msk [vmem:[%s250 + $0x10] sm:$0xff] %vm549, %v547
        %553 = vst.msk [vmem:[%s250 + $0x18] sm:$0xff] %vm549, %v548
        %p554 = scmp.lt.s32.totalorder %s23, 1
        %s555 = scalar_select %p554, %s23, 1
        %p556 = scmp.lt.s32.totalorder %s24, 0
        %s557 = scalar_select %p556, %s24, 0
        %s558 = smul.addr %s555, 4
        %s559 = sadd.s32 %s557, %s558
        %s560 = smul.addr %s559, 8
        %s561 = scalar_lea.vmem %s3, %s560
        %p562 = scmp.lt.s32.totalorder %s23, 1
        %s563 = scalar_select %p562, %s23, 1
        %s564 = smul.addr %s563, 4
        %s565 = smul.addr %s564, 8
        %s566 = scalar_lea.vmem %s4, %s565
        // Predicated region
        $region41: #{tpu_custom_call.1} parent=31 // pred_check
          %p567 = pneg %p121
        $region42: #{tpu_custom_call.1} parent=31 // pred_check_branch
          %569 = sbr.rel (%p567) target = $region44
        $region43: #{tpu_custom_call.1} parent=31 // pred_region
          _
        $region44: #{tpu_custom_call.1} parent=31 // pred_fallthru
          _
        // Predicated region
        $region45: #{tpu_custom_call.1} parent=31 // pred_check
          %p570 = pneg %p147
        $region46: #{tpu_custom_call.1} parent=31 // pred_check_branch
          %572 = sbr.rel (%p570) target = $region48
        $region47: #{tpu_custom_call.1} parent=31 // pred_region
          _
        $region48: #{tpu_custom_call.1} parent=31 // pred_fallthru
          _
      $region32: #{tpu_custom_call.1} parent=5 // pred_fallthru
        _
      %p573 = scmp.le.s32.totalorder 2, %s14
      // Predicated region
      $region49: #{tpu_custom_call.1} parent=5 // pred_check
        %p574 = pneg %p573
      $region50: #{tpu_custom_call.1} parent=5 // pred_check_branch
        %576 = sbr.rel (%p574) target = $region52
      $region51: #{tpu_custom_call.1} parent=5 // pred_region
        %s577 = ssub.s32 %s14, 2
        // Predicated region
        $region53: #{tpu_custom_call.1} parent=51 // pred_check
          %p578 = pneg %p127
        $region54: #{tpu_custom_call.1} parent=51 // pred_check_branch
          %580 = sbr.rel (%p578) target = $region56
        $region55: #{tpu_custom_call.1} parent=51 // pred_region
          %p581 = scmp.lt.s32.totalorder %s25, 1
          %s582 = scalar_select %p581, %s25, 1
          %p583 = scmp.lt.s32.totalorder %s26, 0
          %s584 = scalar_select %p583, %s26, 0
          %s585 = smul.addr %s582, 4
          %s586 = sadd.s32 %s584, %s585
          %s587 = smul.addr %s586, 8
          %s588 = scalar_lea.vmem %s3, %s587
        $region56: #{tpu_custom_call.1} parent=51 // pred_fallthru
          _
        // Predicated region
        $region57: #{tpu_custom_call.1} parent=51 // pred_check
          %p589 = pneg %p153
        $region58: #{tpu_custom_call.1} parent=51 // pred_check_branch
          %591 = sbr.rel (%p589) target = $region60
        $region59: #{tpu_custom_call.1} parent=51 // pred_region
          %p592 = scmp.lt.s32.totalorder %s25, 1
          %s593 = scalar_select %p592, %s25, 1
          %s594 = smul.addr %s593, 4
          %s595 = smul.addr %s594, 8
          %s596 = scalar_lea.vmem %s4, %s595
        $region60: #{tpu_custom_call.1} parent=51 // pred_fallthru
          _
      $region52: #{tpu_custom_call.1} parent=5 // pred_fallthru
        _
    $region6: #{tpu_custom_call.1} parent=1 // loop_footer
      %s18 = sadd.s32 1, %s14
    $region7: #{tpu_custom_call.1} parent=1 // loop_footer_branch
      %13 = sbr.rel target = $region3
    $region8: #{tpu_custom_call.1} parent=1 // loop_exit
      _
    %597 = vsyncpa [#allocation3], 1
    %s598 = scalar_lea.sflag [#allocation3], 1
    %599 = vsyncpa %s598, 1

</llo_original>
